<compile_context>
chip_gen: v7x
topology: tpu7x:2x2x1
jax: 0.10.0
libtpu: 0.0.40
codegen_flags: <defaults>
</compile_context>

<pallas_src>
import functools

import jax
import jax.numpy as jnp
from jax.experimental import pallas as pl
from jax.experimental.pallas import tpu as pltpu


# ----------------------------------------------------------------------------
# pool_size == 2 fast path (Enformer default)
# ----------------------------------------------------------------------------
def _attention_pool_p2_kernel(w_ref, csum_ref, cdiff_ref, x_ref, o_ref, *,
                              np_tile, n_valid, apply_pad_fix):
    x = x_ref[0]                                                       # (d, 2T)

    # Pair sum / difference straight from the interleaved layout: one MXU
    # matmul each against resident 0/+-1 matrices (no rolls, no (d,2T) temps).
    xs = jnp.dot(x, csum_ref[...], preferred_element_type=jnp.float32)   # x0+x1 (d, T)
    xd = jnp.dot(x, cdiff_ref[...], preferred_element_type=jnp.float32)  # x0-x1 (d, T)

    # 1x1 conv is linear & bias-free -> logit difference = W @ (x0 - x1);
    # the conv only runs at the pooled width T (half the full-tile conv work).
    w = w_ref[...].astype(jnp.float32)
    ldiff = jnp.dot(w, xd, preferred_element_type=jnp.float32)           # l0-l1 (d, T)

    # softmax over 2 slots == sigmoid of the logit difference.
    # (tanh form: single EUP op, never overflows, no mask_value subtraction.)
    a0 = 0.5 * (jnp.tanh(0.5 * ldiff) + 1.0)

    if apply_pad_fix:
        # Only compiled when the module pads (n odd).  The pair containing the
        # zero-padded position gets attn = (1, 0) in the reference
        # (masked_fill with -finfo.max + softmax).
        col = (pl.program_id(1) * np_tile
               + jax.lax.broadcasted_iota(jnp.int32, (1, np_tile), 1))
        a0 = jnp.where(2 * col + 1 >= n_valid, 1.0, a0)

    # out = x0*a0 + x1*(1-a0), rewritten in terms of the pair sum/difference.
    o_ref[0] = (0.5 * xs + xd * (a0 - 0.5)).astype(o_ref.dtype)


# ----------------------------------------------------------------------------
# general pool_size path (grouped softmax over P adjacent lanes)
# ----------------------------------------------------------------------------
def _attention_pool_softmax_kernel(w_ref, gsum_ref, x_ref, o_ref, *, pool_size,
                                   np_tile, n_valid, mask_value,
                                   apply_pad_mask):
    P = pool_size
    T = np_tile
    L = P * T

    x = x_ref[0].astype(jnp.float32)                                   # (d, L)
    w = w_ref[...].astype(jnp.float32)
    logits = jnp.dot(w, x, preferred_element_type=jnp.float32)         # (d, L)

    lane = jax.lax.broadcasted_iota(jnp.int32, (1, L), 1)
    if apply_pad_mask:
        # Only compiled when the module actually pads (n % pool_size != 0).
        pos = pl.program_id(1) * L + lane
        logits = jnp.where(pos >= n_valid, mask_value, logits)

    # Per-lane pool-group id.  The in-group neighbour masks are built by
    # rolling the group-id vector with the SAME shift as the data roll, so
    # they are correct regardless of pltpu.roll's rotation convention and cost
    # only a handful of single-row (1, L) ops per grid step.
    gid = jnp.floor(lane.astype(jnp.float32) / P)                      # exact for L < 2^24
    rolls = []
    for s in range(1, P):
        for k in (s, L - s):
            same_group = pltpu.roll(gid, k, axis=1) == gid             # (1, L) bool
            rolls.append((k, same_group))

    # Per-group max (stable softmax) and denominator via XLU lane rolls.
    gmax = logits
    for k, same_group in rolls:
        gmax = jnp.maximum(
            gmax, jnp.where(same_group, pltpu.roll(logits, k, axis=1),
                            mask_value))
    p = jnp.exp(logits - gmax)
    den = p
    for k, same_group in rolls:
        den = den + jnp.where(same_group, pltpu.roll(p, k, axis=1), 0.0)
    attn = p * pl.reciprocal(den, approx=True)

    # Compaction: sum every P adjacent lanes into one output lane with a single
    # MXU matmul against the resident 0/1 group-sum matrix.
    out = jnp.dot(x * attn, gsum_ref[...].astype(jnp.float32),
                  preferred_element_type=jnp.float32)                  # (d, T)
    o_ref[0] = out.astype(o_ref.dtype)


# ----------------------------------------------------------------------------
# wrapper
# ----------------------------------------------------------------------------
def attention_pool(x, w, pool_size=2, *, np_tile_max=None):
    """Forward pass of enformer AttentionPool as a Pallas TPU kernel.

    x: (b, d, n) input;  w: (d, d) 1x1-conv weight (module init: 2 * I).
    np_tile_max: lane tile for the pooled axis (multiple of 128).  The default
      (256) suits all of v5e/v6e/v7x; the tile is shrunk automatically if the
      VMEM estimate does not fit the chip-aware budget.  Passing bf16 x / w
      halves DMA bytes and the resident weight footprint (accumulation is f32).
    """
    b, d, n = x.shape
    dtype = x.dtype
    P = int(pool_size)

    # Mirror the PyTorch module: it pads by (n % pool_size); that only yields a
    # pool-divisible length when pool_size == 2 or there is no remainder.
    remainder = n % P
    n_mod = n + remainder
    if n_mod % P != 0:
        raise ValueError(
            "AttentionPool pads by (n % pool_size); the padded length must be "
            "divisible by pool_size (always true for pool_size=2).")
    np_out = n_mod // P

    # ---- chip-aware VMEM budget (review: never exceed v7x's 64 MiB/TC). ----
    try:
        vmem_cap = int(pltpu.get_tpu_info().vmem_capacity_bytes)
    except Exception:
        vmem_cap = 64 * 1024 * 1024          # conservative (v7x per-core figure)
    vmem_budget = max(24 * 1024 * 1024,
                      min((3 * vmem_cap) // 4, 100 * 1024 * 1024))

    if np_tile_max is None:
        np_tile_max = 256
    assert np_tile_max > 0 and np_tile_max % 128 == 0

    itemsize = jnp.dtype(dtype).itemsize
    w_itemsize = jnp.dtype(w.dtype).itemsize

    def _vmem_estimate(T):
        L = P * T
        est = 2 * (d * L + d * T) * itemsize          # double-buffered x / out
        est += 2 * d * d * w_itemsize                  # weight (constant index map)
        if P == 2:
            est += 2 * 2 * L * T * itemsize            # resident csum + cdiff
            est += 6 * d * T * 4                       # (d, T) f32 temporaries
        else:
            est += 2 * L * T * itemsize                # resident group-sum matrix
            est += 6 * d * L * 4                       # (d, L) f32 temporaries
        return est

    # Lane-dense tiling of the pooled axis; shrink the tile until it fits.
    np_tile = min(np_tile_max, 128 * pl.cdiv(np_out, 128))
    while np_tile > 128 and _vmem_estimate(np_tile) > vmem_budget:
        np_tile -= 128

    num_tiles = pl.cdiv(np_out, np_tile)
    np_padded = np_tile * num_tiles
    l_tile = P * np_tile
    n_padded = P * np_padded
    if n_padded != n:            # only when n is not already tile-aligned
        x = jnp.pad(x, ((0, 0), (0, 0), (0, n_padded - n)))

    # Resident constant matrices (built once on the host, constant index_map).
    lane_idx = jnp.arange(l_tile)
    csum = (lane_idx[:, None] // P
            == jnp.arange(np_tile)[None, :]).astype(dtype)             # (L, T)

    w_spec = pl.BlockSpec((d, d), lambda bi, ti: (0, 0))
    const_spec = pl.BlockSpec((l_tile, np_tile), lambda bi, ti: (0, 0))
    x_spec = pl.BlockSpec((1, d, l_tile), lambda bi, ti: (bi, 0, ti))
    out_spec = pl.BlockSpec((1, d, np_tile), lambda bi, ti: (bi, 0, ti))

    if P == 2:
        sign = jnp.where(lane_idx % 2 == 0, 1.0, -1.0).astype(dtype)
        cdiff = csum * sign[:, None]                                    # (L, T)
        kernel = functools.partial(
            _attention_pool_p2_kernel, np_tile=np_tile, n_valid=n,
            apply_pad_fix=remainder > 0)
        in_specs = [w_spec, const_spec, const_spec, x_spec]
        operands = (w, csum, cdiff, x)
    else:
        kernel = functools.partial(
            _attention_pool_softmax_kernel, pool_size=P, np_tile=np_tile,
            n_valid=n, mask_value=-float(jnp.finfo(jnp.float32).max),
            apply_pad_mask=remainder > 0)
        in_specs = [w_spec, const_spec, x_spec]
        operands = (w, csum, x)

    out = pl.pallas_call(
        kernel,
        out_shape=jax.ShapeDtypeStruct((b, d, np_padded), dtype),
        grid_spec=pltpu.PrefetchScalarGridSpec(
            num_scalar_prefetch=0,
            grid=(b, num_tiles),
            in_specs=in_specs,
            out_specs=out_spec,
        ),
        compiler_params=pltpu.CompilerParams(
            dimension_semantics=("parallel", "parallel"),
            vmem_limit_bytes=int(vmem_budget)),
    )(*operands)

    if np_padded != np_out:
        out = out[..., :np_out]
    return out


# ----------------------------------------------------------------------------
# pure-JAX mirror of the PyTorch forward (validation reference)
# ----------------------------------------------------------------------------
def attention_pool_ref(x, w, pool_size=2):
    b, d, n = x.shape
    dtype = x.dtype
    remainder = n % pool_size
    needs_padding = remainder > 0
    if needs_padding:
        x = jnp.pad(x, ((0, 0), (0, 0), (0, remainder)))
        mask = jnp.concatenate(
            [jnp.zeros((b, 1, n), bool), jnp.ones((b, 1, remainder), bool)],
            axis=-1)
    np_ = x.shape[-1] // pool_size
    x_r = x.reshape(b, d, np_, pool_size)                 # 'b d (n p) -> b d n p'
    logits = jnp.einsum('oc,bcnp->bonp', w, x_r)          # 1x1 conv, no bias
    if needs_padding:
        m_r = mask.reshape(b, 1, np_, pool_size)
        logits = jnp.where(m_r, -jnp.finfo(dtype).max, logits)
    attn = jax.nn.softmax(logits, axis=-1)
    return (x_r * attn).sum(axis=-1)


if __name__ == "__main__":
    key = jax.random.PRNGKey(0)
    k1, k2, k3 = jax.random.split(key, 3)

    # Case 1: module as initialized (dirac * 2 weight); odd length exercises
    # the module's pad + mask path; pooled length fits a single lane tile.
    b, d, n, pool_size = 2, 16, 15, 2
    x1 = jax.random.normal(k1, (b, d, n), dtype=jnp.float32)
    w1 = 2.0 * jnp.eye(d, dtype=jnp.float32)
    out1 = jax.block_until_ready(attention_pool(x1, w1, pool_size=pool_size))
    ref1 = attention_pool_ref(x1, w1, pool_size=pool_size)
    assert out1.shape == ref1.shape == (b, d, (n + n % pool_size) // pool_size)
    # Tolerance documents/absorbs worst-case MXU rounding at default matmul
    # precision (review note); structural errors would be O(1).
    assert jnp.allclose(out1, ref1, atol=5e-2, rtol=5e-2), "mismatch (case 1)"

    # Case 2: general (trained-like) weight, longer odd sequence -> multi-tile
    # grid, pad fix on the last pooled column, and the output trim path.
    b2, d2, n2 = 1, 8, 1031
    x2 = 0.5 * jax.random.normal(k2, (b2, d2, n2), dtype=jnp.float32)
    w2 = 0.3 * jax.random.normal(k3, (d2, d2), dtype=jnp.float32)
    out2 = jax.block_until_ready(
        attention_pool(x2, w2, pool_size=pool_size, np_tile_max=128))
    ref2 = attention_pool_ref(x2, w2, pool_size=pool_size)
    assert out2.shape == ref2.shape
    assert jnp.allclose(out2, ref2, atol=5e-2, rtol=5e-2), "mismatch (case 2)"

    print("KERNEL_OK")
</pallas_src>

<mosaic_0001>
module attributes {stable_mosaic.version = 11 : i64} {
  func.func @_attention_pool_p2_kernel(%arg0: i32, %arg1: i32, %arg2: memref<16x16xf32, #tpu.memory_space<vmem>>, %arg3: memref<256x128xf32, #tpu.memory_space<vmem>>, %arg4: memref<256x128xf32, #tpu.memory_space<vmem>>, %arg5: memref<1x16x256xf32, #tpu.memory_space<vmem>>, %arg6: memref<1x16x128xf32, #tpu.memory_space<vmem>>) attributes {dimension_semantics = [#tpu.dimension_semantics<parallel>, #tpu.dimension_semantics<parallel>], iteration_bounds = array<i64: 2, 1>, scalar_prefetch = 0 : i64, scratch_operands = 0 : i64, tpu.core_type = #tpu.core_type<tc>, window_params = [{pipeline_mode = #tpu.pipeline_mode<synchronous>, transform_indices = @transform_0, window_bounds = array<i64: 16, 16>}, {pipeline_mode = #tpu.pipeline_mode<synchronous>, transform_indices = @transform_1, window_bounds = array<i64: 256, 128>}, {pipeline_mode = #tpu.pipeline_mode<synchronous>, transform_indices = @transform_2, window_bounds = array<i64: 256, 128>}, {transform_indices = @transform_3, window_bounds = array<i64: 1, 16, 256>}, {transform_indices = @transform_4, window_bounds = array<i64: 1, 16, 128>}]} {
    %c0 = arith.constant 0 : index
    %c0_0 = arith.constant 0 : index
    %c0_1 = arith.constant 0 : index
    %0 = vector.load %arg5[%c0, %c0_0, %c0_1] : memref<1x16x256xf32, #tpu.memory_space<vmem>>, vector<1x16x256xf32>
    %1 = vector.shape_cast %0 : vector<1x16x256xf32> to vector<16x256xf32>
    %c0_2 = arith.constant 0 : index
    %c0_3 = arith.constant 0 : index
    %2 = vector.load %arg3[%c0_2, %c0_3] : memref<256x128xf32, #tpu.memory_space<vmem>>, vector<256x128xf32>
    %cst = arith.constant dense<0.000000e+00> : vector<16x128xf32>
    %3 = tpu.matmul %1, %2, %cst {dimension_numbers = #tpu.dot_dimension_numbers<[1], [0], [0], [1], [0, 0, 1, 1], [], []>} : vector<16x256xf32>, vector<256x128xf32>, vector<16x128xf32> -> vector<16x128xf32>
    %c0_4 = arith.constant 0 : index
    %c0_5 = arith.constant 0 : index
    %4 = vector.load %arg4[%c0_4, %c0_5] : memref<256x128xf32, #tpu.memory_space<vmem>>, vector<256x128xf32>
    %cst_6 = arith.constant dense<0.000000e+00> : vector<16x128xf32>
    %5 = tpu.matmul %1, %4, %cst_6 {dimension_numbers = #tpu.dot_dimension_numbers<[1], [0], [0], [1], [0, 0, 1, 1], [], []>} : vector<16x256xf32>, vector<256x128xf32>, vector<16x128xf32> -> vector<16x128xf32>
    %c0_7 = arith.constant 0 : index
    %c0_8 = arith.constant 0 : index
    %6 = vector.load %arg2[%c0_7, %c0_8] : memref<16x16xf32, #tpu.memory_space<vmem>>, vector<16x16xf32>
    %cst_9 = arith.constant dense<0.000000e+00> : vector<16x128xf32>
    %7 = tpu.matmul %6, %5, %cst_9 {dimension_numbers = #tpu.dot_dimension_numbers<[1], [0], [0], [1], [0, 0, 1, 1], [], []>} : vector<16x16xf32>, vector<16x128xf32>, vector<16x128xf32> -> vector<16x128xf32>
    %cst_10 = arith.constant 5.000000e-01 : f32
    %8 = vector.broadcast %cst_10 : f32 to vector<16x128xf32>
    %9 = arith.mulf %8, %7 : vector<16x128xf32>
    %10 = math.tanh %9 : vector<16x128xf32>
    %cst_11 = arith.constant 1.000000e+00 : f32
    %11 = vector.broadcast %cst_11 : f32 to vector<16x128xf32>
    %12 = arith.addf %10, %11 : vector<16x128xf32>
    %cst_12 = arith.constant 5.000000e-01 : f32
    %13 = vector.broadcast %cst_12 : f32 to vector<16x128xf32>
    %14 = arith.mulf %13, %12 : vector<16x128xf32>
    %c128_i32 = arith.constant 128 : i32
    %15 = arith.muli %arg1, %c128_i32 : i32
    %16 = tpu.iota {dimensions = array<i32: 1>} : vector<1x128xi32>
    %17 = vector.broadcast %15 : i32 to vector<1x128xi32>
    %18 = arith.addi %17, %16 : vector<1x128xi32>
    %c2_i32 = arith.constant 2 : i32
    %19 = vector.broadcast %c2_i32 : i32 to vector<1x128xi32>
    %20 = arith.muli %19, %18 : vector<1x128xi32>
    %c1_i32 = arith.constant 1 : i32
    %21 = vector.broadcast %c1_i32 : i32 to vector<1x128xi32>
    %22 = arith.addi %20, %21 : vector<1x128xi32>
    %c15_i32 = arith.constant 15 : i32
    %23 = vector.broadcast %c15_i32 : i32 to vector<1x128xi32>
    %24 = arith.cmpi sge, %22, %23 : vector<1x128xi32>
    %cst_13 = arith.constant 1.000000e+00 : f32
    %25 = vector.shape_cast %24 : vector<1x128xi1> to vector<1x128xi1>
    %26 = vector.broadcast %25 : vector<1x128xi1> to vector<16x128xi1>
    %27 = vector.broadcast %cst_13 : f32 to vector<16x128xf32>
    %28 = arith.select %26, %27, %14 : vector<16x128xi1>, vector<16x128xf32>
    %cst_14 = arith.constant 5.000000e-01 : f32
    %29 = vector.broadcast %cst_14 : f32 to vector<16x128xf32>
    %30 = arith.mulf %29, %3 : vector<16x128xf32>
    %cst_15 = arith.constant 5.000000e-01 : f32
    %31 = vector.broadcast %cst_15 : f32 to vector<16x128xf32>
    %32 = arith.subf %28, %31 : vector<16x128xf32>
    %33 = arith.mulf %5, %32 : vector<16x128xf32>
    %34 = arith.addf %30, %33 : vector<16x128xf32>
    %c0_16 = arith.constant 0 : index
    %c0_17 = arith.constant 0 : index
    %c0_18 = arith.constant 0 : index
    %35 = vector.load %arg6[%c0_16, %c0_17, %c0_18] : memref<1x16x128xf32, #tpu.memory_space<vmem>>, vector<1x16x128xf32>
    %36 = vector.shape_cast %35 : vector<1x16x128xf32> to vector<16x128xf32>
    %37 = vector.shape_cast %34 : vector<16x128xf32> to vector<1x16x128xf32>
    tpu.vector_store %arg6[%c0_16, %c0_17, %c0_18], %37 {strides = array<i32>} : memref<1x16x128xf32, #tpu.memory_space<vmem>>, vector<1x16x128xf32>,
    return
  }
  func.func @transform_0(%arg0: i32, %arg1: i32) -> (i32, i32) {
    %c0_i32 = arith.constant 0 : i32
    %c0_i32_0 = arith.constant 0 : i32
    %c0_i32_1 = arith.constant 0 : i32
    return %c0_i32, %c0_i32_0 : i32, i32
  }
  func.func @transform_1(%arg0: i32, %arg1: i32) -> (i32, i32) {
    %c0_i32 = arith.constant 0 : i32
    %c0_i32_0 = arith.constant 0 : i32
    %c0_i32_1 = arith.constant 0 : i32
    return %c0_i32, %c0_i32_0 : i32, i32
  }
  func.func @transform_2(%arg0: i32, %arg1: i32) -> (i32, i32) {
    %c0_i32 = arith.constant 0 : i32
    %c0_i32_0 = arith.constant 0 : i32
    %c0_i32_1 = arith.constant 0 : i32
    return %c0_i32, %c0_i32_0 : i32, i32
  }
  func.func @transform_3(%arg0: i32, %arg1: i32) -> (i32, i32, i32) {
    %c0_i32 = arith.constant 0 : i32
    %c0_i32_0 = arith.constant 0 : i32
    return %arg0, %c0_i32, %arg1 : i32, i32, i32
  }
  func.func @transform_4(%arg0: i32, %arg1: i32) -> (i32, i32, i32) {
    %c0_i32 = arith.constant 0 : i32
    %c0_i32_0 = arith.constant 0 : i32
    return %arg0, %c0_i32, %arg1 : i32, i32, i32
  }
}

</mosaic_0001>

<llo_original>
// kernel: tpu_custom_call.1
$region0: #{tpu_custom_call.1}
  #allocation0 [shape = 'u32[]', space=smem, size = 0x4, offset = 0x4, fixed_abs, tag = 'smem constant byte address 0x4 - core index']
  #allocation1 [shape = 'u32[144,128]{1,0:T(1,128)}', space=vmem, size = 0x12000, scoped, tag = 'internal scratch']
  %s0 = inlined_call_operand.hbm [shape: f32[16,16], index: 0, kind: input, shape index: {}]
  %s1 = inlined_call_operand.hbm [shape: f32[256,128], index: 1, kind: input, shape index: {}]
  %s2 = inlined_call_operand.hbm [shape: f32[256,128], index: 2, kind: input, shape index: {}]
  %s3 = inlined_call_operand.hbm [shape: f32[2,16,256], index: 3, kind: input, shape index: {}]
  %s4 = inlined_call_operand.hbm [shape: f32[2,16,128], index: 4, kind: output, shape index: {}]
  %s5 = sld [smem:[#allocation0]]
  $region65: #{tpu_custom_call.1} parent=0
    _
  %s7 = ssub.s32 1, %s5
  %s8 = scalar_select 0, %s7, %s5
  $region1: #{tpu_custom_call.1} parent=0
    #allocation2 [shape = 'u8[8192]{0}', space=vmem, size = 0x2000, scoped, tag = 'input window, operand 0, single buffered']
    #allocation3 [shape = 's32[2]{0}', space=sflag, size = 0x8, scoped, tag = 'scoped memory for tpu_custom_call.1']
    #allocation4 [shape = 's32[2]{0}', space=sflag, size = 0x8, scoped, tag = 'scoped memory for tpu_custom_call.1']
    #allocation5 [shape = 'u8[131072]{0}', space=vmem, size = 0x20000, scoped, tag = 'input window, operand 1, single buffered']
    #allocation6 [shape = 's32[1]{0}', space=sflag, size = 0x4, scoped, tag = 'scoped memory for tpu_custom_call.1']
    #allocation7 [shape = 'u8[131072]{0}', space=vmem, size = 0x20000, scoped, tag = 'input window, operand 2, single buffered']
    #allocation8 [shape = 'u8[32768]{0}', space=vmem, size = 0x8000, scoped, tag = 'input window, operand 3']
    #allocation9 [shape = 's32[2]{0}', space=sflag, size = 0x8, scoped, tag = 'scoped memory for tpu_custom_call.1']
    #allocation10 [shape = 'u8[16384]{0}', space=vmem, size = 0x4000, scoped, tag = 'output window, operand 0']
    %9 = vsyncpa [#allocation3], 0
    %10 = vsyncpa [#allocation6], 0
    %11 = vsyncpa [#allocation9], 0
    %s12 = scalar_lea.sflag [#allocation9], 1
    %13 = vsyncpa %s12, 0
    %14 = vsyncpa [#allocation4], 0
    %s15 = scalar_lea.sflag [#allocation4], 1
    %16 = vsyncpa %s15, 0
    loop: start=0, step=1, limit=4
    $region2: #{tpu_custom_call.1} parent=1 // loop_pre_header
      _
    $region3: #{tpu_custom_call.1} parent=1 // loop_header
      %s18 = sphi 0, %s22
      %p19 = scmp.ge.s32.totalorder %s18, 4
      %s25 = sphi 0, %s37
      %s26 = sphi 0, %s33
      %s27 = sphi 0, %s25
      %s28 = sphi 0, %s26
      %s29 = sphi 0, %s27
      %s30 = sphi 0, %s28
      %s38 = sphi 0, %s38
      %s40 = sphi 0, %s38
      %s41 = sphi 0, %s40
      %s55 = sphi 0, %s41
      %s59 = sphi 0, %s59
      %s61 = sphi 0, %s59
      %s62 = sphi 0, %s61
      %s76 = sphi 0, %s62
      %s80 = sphi 0, %s80
      %s82 = sphi 0, %s80
      %s83 = sphi 0, %s82
      %s97 = sphi 0, %s83
      %s105 = sphi 0, %s107
      %s108 = sphi 0, %s105
      %s109 = sphi 0, %s108
      %s125 = sphi 0, %s109
      %s133 = sphi 0, %s135
      %s136 = sphi 0, %s133
      %s137 = sphi 0, %s136
      %s153 = sphi 0, %s137
    $region4: #{tpu_custom_call.1} parent=1 // loop_header_branch
      %21 = sbr.rel (%p19) target = $region8
    $region5: #{tpu_custom_call.1} parent=1 // loop_body
      %s23 = ssub.s32 %s18, 1
      %s24 = ssub.s32 %s18, 2
      %s31 = sadd.s32 1, %s26
      %p32 = scmp.ge.s32.totalorder %s31, 1
      %s33 = scalar_select %p32, 0, %s31
      %s34 = sadd.s32 1, %s25
      %s35 = scalar_select %p32, %s34, %s25
      %p36 = scmp.ge.s32.totalorder %s35, 2
      %s37 = scalar_select %p36, 0, %s35
      %s39 = sadd.s32 %s38, 1
      %p42 = scmp.eq.s32.totalorder %s18, 1
      %p43 = scmp.ne.s32.totalorder %s38, %s40
      %p44 = scmp.eq.s32.totalorder %s18, 0
      %p45 = por %p43, %p44
      %p46 = scmp.ne.s32.totalorder %s38, %s40
      %p47 = scmp.eq.s32.totalorder %s23, 1
      %p48 = por %p46, %p47
      %p49 = scmp.ne.s32.totalorder %s40, %s41
      %p50 = scmp.eq.s32.totalorder %s23, 0
      %p51 = por %p49, %p50
      %p52 = scmp.ne.s32.totalorder %s40, %s41
      %p53 = scmp.eq.s32.totalorder %s24, 1
      %p54 = por %p52, %p53
      %p56 = scmp.ne.s32.totalorder %s41, %s55
      %p57 = scmp.eq.s32.totalorder %s24, 0
      %p58 = por %p56, %p57
      %s60 = sadd.s32 %s59, 1
      %p63 = scmp.eq.s32.totalorder %s18, 1
      %p64 = scmp.ne.s32.totalorder %s59, %s61
      %p65 = scmp.eq.s32.totalorder %s18, 0
      %p66 = por %p64, %p65
      %p67 = scmp.ne.s32.totalorder %s59, %s61
      %p68 = scmp.eq.s32.totalorder %s23, 1
      %p69 = por %p67, %p68
      %p70 = scmp.ne.s32.totalorder %s61, %s62
      %p71 = scmp.eq.s32.totalorder %s23, 0
      %p72 = por %p70, %p71
      %p73 = scmp.ne.s32.totalorder %s61, %s62
      %p74 = scmp.eq.s32.totalorder %s24, 1
      %p75 = por %p73, %p74
      %p77 = scmp.ne.s32.totalorder %s62, %s76
      %p78 = scmp.eq.s32.totalorder %s24, 0
      %p79 = por %p77, %p78
      %s81 = sadd.s32 %s80, 1
      %p84 = scmp.eq.s32.totalorder %s18, 1
      %p85 = scmp.ne.s32.totalorder %s80, %s82
      %p86 = scmp.eq.s32.totalorder %s18, 0
      %p87 = por %p85, %p86
      %p88 = scmp.ne.s32.totalorder %s80, %s82
      %p89 = scmp.eq.s32.totalorder %s23, 1
      %p90 = por %p88, %p89
      %p91 = scmp.ne.s32.totalorder %s82, %s83
      %p92 = scmp.eq.s32.totalorder %s23, 0
      %p93 = por %p91, %p92
      %p94 = scmp.ne.s32.totalorder %s82, %s83
      %p95 = scmp.eq.s32.totalorder %s24, 1
      %p96 = por %p94, %p95
      %p98 = scmp.ne.s32.totalorder %s83, %s97
      %p99 = scmp.eq.s32.totalorder %s24, 0
      %p100 = por %p98, %p99
      %s101 = ssub.s32 %s25, %s37
      %s102 = ssub.s32 %s26, %s33
      %s103 = sor.u32 %s101, %s102
      %p104 = scmp.eq.s32.totalorder %s103, 0
      %s106 = sadd.s32 %s105, 1
      %s107 = scalar_select %p104, %s105, %s106
      %p110 = pneg %p104
      %p111 = scmp.eq.s32.totalorder %s18, 1
      %p112 = por %p110, %p111
      %p113 = scmp.ne.s32.totalorder %s105, %s108
      %p114 = scmp.eq.s32.totalorder %s18, 0
      %p115 = por %p113, %p114
      %p116 = scmp.ne.s32.totalorder %s105, %s108
      %p117 = scmp.eq.s32.totalorder %s23, 1
      %p118 = por %p116, %p117
      %p119 = scmp.ne.s32.totalorder %s108, %s109
      %p120 = scmp.eq.s32.totalorder %s23, 0
      %p121 = por %p119, %p120
      %p122 = scmp.ne.s32.totalorder %s108, %s109
      %p123 = scmp.eq.s32.totalorder %s24, 1
      %p124 = por %p122, %p123
      %p126 = scmp.ne.s32.totalorder %s109, %s125
      %p127 = scmp.eq.s32.totalorder %s24, 0
      %p128 = por %p126, %p127
      %s129 = ssub.s32 %s25, %s37
      %s130 = ssub.s32 %s26, %s33
      %s131 = sor.u32 %s129, %s130
      %p132 = scmp.eq.s32.totalorder %s131, 0
      %s134 = sadd.s32 %s133, 1
      %s135 = scalar_select %p132, %s133, %s134
      %p138 = pneg %p132
      %p139 = scmp.eq.s32.totalorder %s18, 1
      %p140 = por %p138, %p139
      %p141 = scmp.ne.s32.totalorder %s133, %s136
      %p142 = scmp.eq.s32.totalorder %s18, 0
      %p143 = por %p141, %p142
      %p144 = scmp.ne.s32.totalorder %s133, %s136
      %p145 = scmp.eq.s32.totalorder %s23, 1
      %p146 = por %p144, %p145
      %p147 = scmp.ne.s32.totalorder %s136, %s137
      %p148 = scmp.eq.s32.totalorder %s23, 0
      %p149 = por %p147, %p148
      %p150 = scmp.ne.s32.totalorder %s136, %s137
      %p151 = scmp.eq.s32.totalorder %s24, 1
      %p152 = por %p150, %p151
      %p154 = scmp.ne.s32.totalorder %s137, %s153
      %p155 = scmp.eq.s32.totalorder %s24, 0
      %p156 = por %p154, %p155
      %p157 = scmp.le.s32.totalorder 1, %s18
      %p158 = scmp.lt.s32.totalorder %s18, 3
      %p159 = pnand %p157, %p158
      %p160 = pneg %p159
      // Predicated region
      $region9: #{tpu_custom_call.1} parent=5 // pred_check
        _
      $region10: #{tpu_custom_call.1} parent=5 // pred_check_branch
        %162 = sbr.rel (%p159) target = $region12
      $region11: #{tpu_custom_call.1} parent=5 // pred_region
        %s163 = ssub.s32 %s18, 1
        // Predicated region
        $region13: #{tpu_custom_call.1} parent=11 // pred_check
          %p164 = pneg %p51
        $region14: #{tpu_custom_call.1} parent=11 // pred_check_branch
          %166 = sbr.rel (%p164) target = $region16
        $region15: #{tpu_custom_call.1} parent=11 // pred_region
          %s168 = ssub.s32 256, 256
          %169 = vsyncadd [#allocation3], %s168
          %s170 = sshll.u32 [#allocation2], 4
          %s171 = int_to_ptr.vmem [resolvable:$true] %s170
          %176 = dma.hbm_to_vmem [thread:$0]  %s0, 256, %s171, [#allocation3], 128, 128, 8
        $region16: #{tpu_custom_call.1} parent=11 // pred_fallthru
          _
        // Predicated region
        $region17: #{tpu_custom_call.1} parent=11 // pred_check
          %p177 = pneg %p72
        $region18: #{tpu_custom_call.1} parent=11 // pred_check_branch
          %179 = sbr.rel (%p177) target = $region20
        $region19: #{tpu_custom_call.1} parent=11 // pred_region
          %s181 = ssub.s32 4096, 4096
          %182 = vsyncadd [#allocation6], %s181
          %s183 = sshll.u32 [#allocation5], 4
          %s184 = int_to_ptr.vmem [resolvable:$true] %s183
          %189 = dma.hbm_to_vmem [thread:$0]  %s1, 4096, %s184, [#allocation6], 128, 128, 8
        $region20: #{tpu_custom_call.1} parent=11 // pred_fallthru
          _
        // Predicated region
        $region21: #{tpu_custom_call.1} parent=11 // pred_check
          %p190 = pneg %p93
        $region22: #{tpu_custom_call.1} parent=11 // pred_check_branch
          %192 = sbr.rel (%p190) target = $region24
        $region23: #{tpu_custom_call.1} parent=11 // pred_region
          %s194 = ssub.s32 4096, 4096
          %195 = vsyncadd [#allocation6], %s194
          %s196 = sshll.u32 [#allocation7], 4
          %s197 = int_to_ptr.vmem [resolvable:$true] %s196
          %202 = dma.hbm_to_vmem [thread:$0]  %s2, 4096, %s197, [#allocation6], 128, 128, 8
        $region24: #{tpu_custom_call.1} parent=11 // pred_fallthru
          _
      $region12: #{tpu_custom_call.1} parent=5 // pred_fallthru
        _
      %p203 = scmp.lt.s32.totalorder %s18, 2
      // Predicated region
      $region25: #{tpu_custom_call.1} parent=5 // pred_check
        %p204 = pneg %p203
      $region26: #{tpu_custom_call.1} parent=5 // pred_check_branch
        %206 = sbr.rel (%p204) target = $region28
      $region27: #{tpu_custom_call.1} parent=5 // pred_region
        // Predicated region
        $region29: #{tpu_custom_call.1} parent=27 // pred_check
          %p207 = pneg %p115
        $region30: #{tpu_custom_call.1} parent=27 // pred_check_branch
          %209 = sbr.rel (%p207) target = $region32
        $region31: #{tpu_custom_call.1} parent=27 // pred_region
          %s210 = sand.u32 %s105, 1
          %s211 = scalar_lea.sflag [#allocation9], %s210
          %s212 = sand.u32 %s105, 1
          %s213 = smul.addr %s212, 32
          %s214 = scalar_lea.vmem [#allocation8], %s213
          %s215 = smul.u32 2, %s26
          %s217 = ssub.s32 512, 512
          %218 = vsyncadd %s211, %s217
          %s219 = smul.addr %s25, 4
          %s220 = sadd.s32 %s215, %s219
          %s221 = smul.addr %s220, 128
          %s222 = scalar_lea.hbm %s3, %s221
          %s223 = sshll.u32 %s214, 4
          %s224 = int_to_ptr.vmem [resolvable:$true] %s223
          %229 = dma.hbm_to_vmem [thread:$0]  %s222, 512, %s224, %s211, 256, 256, 16
        $region32: #{tpu_custom_call.1} parent=27 // pred_fallthru
          _
      $region28: #{tpu_custom_call.1} parent=5 // pred_fallthru
        _
      %p230 = scmp.le.s32.totalorder 1, %s18
      %p231 = scmp.lt.s32.totalorder %s18, 3
      %p232 = pnand %p230, %p231
      %p233 = pneg %p232
      // Predicated region
      $region33: #{tpu_custom_call.1} parent=5 // pred_check
        _
      $region34: #{tpu_custom_call.1} parent=5 // pred_check_branch
        %235 = sbr.rel (%p232) target = $region36
      $region35: #{tpu_custom_call.1} parent=5 // pred_region
        %s236 = ssub.s32 %s18, 1
        // Predicated region
        $region37: #{tpu_custom_call.1} parent=35 // pred_check
          %p237 = pneg %p51
        $region38: #{tpu_custom_call.1} parent=35 // pred_check_branch
          %239 = sbr.rel (%p237) target = $region40
        $region39: #{tpu_custom_call.1} parent=35 // pred_region
          %240 = dma.done [#allocation3], 256
        $region40: #{tpu_custom_call.1} parent=35 // pred_fallthru
          _
        // Predicated region
        $region41: #{tpu_custom_call.1} parent=35 // pred_check
          %p241 = pneg %p72
        $region42: #{tpu_custom_call.1} parent=35 // pred_check_branch
          %243 = sbr.rel (%p241) target = $region44
        $region43: #{tpu_custom_call.1} parent=35 // pred_region
          %244 = dma.done [#allocation6], 4096
        $region44: #{tpu_custom_call.1} parent=35 // pred_fallthru
          _
        // Predicated region
        $region45: #{tpu_custom_call.1} parent=35 // pred_check
          %p245 = pneg %p93
        $region46: #{tpu_custom_call.1} parent=35 // pred_check_branch
          %247 = sbr.rel (%p245) target = $region48
        $region47: #{tpu_custom_call.1} parent=35 // pred_region
          %248 = dma.done [#allocation6], 4096
        $region48: #{tpu_custom_call.1} parent=35 // pred_fallthru
          _
        %s249 = sand.u32 %s108, 1
        %s250 = scalar_lea.sflag [#allocation9], %s249
        %s251 = sand.u32 %s108, 1
        %s252 = smul.addr %s251, 32
        %s253 = scalar_lea.vmem [#allocation8], %s252
        // Predicated region
        $region49: #{tpu_custom_call.1} parent=35 // pred_check
          %p254 = pneg %p121
        $region50: #{tpu_custom_call.1} parent=35 // pred_check_branch
          %256 = sbr.rel (%p254) target = $region52
        $region51: #{tpu_custom_call.1} parent=35 // pred_region
          %257 = dma.done %s250, 512
        $region52: #{tpu_custom_call.1} parent=35 // pred_fallthru
          _
        %p258 = pneg %p51
        %p259 = pneg %p48
        %p260 = pneg %p72
        %p261 = pneg %p69
        %p262 = pneg %p93
        %p263 = pneg %p90
        %s264 = sand.u32 %s108, 1
        %s265 = scalar_lea.sflag [#allocation9], %s264
        %s266 = sand.u32 %s108, 1
        %s267 = smul.addr %s266, 32
        %s268 = scalar_lea.vmem [#allocation8], %s267
        %p269 = pneg %p121
        %p270 = pneg %p118
        %p271 = pneg %p149
        %p272 = pneg %p146
        %s273 = sand.u32 %s136, 1
        %s274 = scalar_lea.sflag [#allocation4], %s273
        %s275 = sand.u32 %s136, 1
        %s276 = smul.addr %s275, 16
        %s277 = scalar_lea.vmem [#allocation10], %s276
        %s278 = smul.u32 2, %s28
        %v279 = vld [vmem:[%s253] sm:$0xff]
        %v280 = vld [vmem:[%s253 + $0x8] sm:$0xff]
        %v281 = vld [vmem:[%s253 + $0x10] sm:$0xff]
        %v282 = vld [vmem:[%s253 + $0x18] sm:$0xff]
        %v283 = vld [vmem:[#allocation5] sm:$0xff]
        %v284 = vld [vmem:[#allocation5 + $0x8] sm:$0xff]
        %v285 = vld [vmem:[#allocation5 + $0x10] sm:$0xff]
        %v286 = vld [vmem:[#allocation5 + $0x18] sm:$0xff]
        %v287 = vld [vmem:[#allocation5 + $0x20] sm:$0xff]
        %v288 = vld [vmem:[#allocation5 + $0x28] sm:$0xff]
        %v289 = vld [vmem:[#allocation5 + $0x30] sm:$0xff]
        %v290 = vld [vmem:[#allocation5 + $0x38] sm:$0xff]
        %v291 = vld [vmem:[#allocation5 + $0x40] sm:$0xff]
        %v292 = vld [vmem:[#allocation5 + $0x48] sm:$0xff]
        %v293 = vld [vmem:[#allocation5 + $0x50] sm:$0xff]
        %v294 = vld [vmem:[#allocation5 + $0x58] sm:$0xff]
        %v295 = vld [vmem:[#allocation5 + $0x60] sm:$0xff]
        %v296 = vld [vmem:[#allocation5 + $0x68] sm:$0xff]
        %v297 = vld [vmem:[#allocation5 + $0x70] sm:$0xff]
        %v298 = vld [vmem:[#allocation5 + $0x78] sm:$0xff]
        %v299 = vld [vmem:[#allocation5 + $0x80] sm:$0xff]
        %v300 = vld [vmem:[#allocation5 + $0x88] sm:$0xff]
        %v301 = vld [vmem:[#allocation5 + $0x90] sm:$0xff]
        %v302 = vld [vmem:[#allocation5 + $0x98] sm:$0xff]
        %v303 = vld [vmem:[#allocation5 + $0xa0] sm:$0xff]
        %v304 = vld [vmem:[#allocation5 + $0xa8] sm:$0xff]
        %v305 = vld [vmem:[#allocation5 + $0xb0] sm:$0xff]
        %v306 = vld [vmem:[#allocation5 + $0xb8] sm:$0xff]
        %v307 = vld [vmem:[#allocation5 + $0xc0] sm:$0xff]
        %v308 = vld [vmem:[#allocation5 + $0xc8] sm:$0xff]
        %v309 = vld [vmem:[#allocation5 + $0xd0] sm:$0xff]
        %v310 = vld [vmem:[#allocation5 + $0xd8] sm:$0xff]
        %v311 = vld [vmem:[#allocation5 + $0xe0] sm:$0xff]
        %v312 = vld [vmem:[#allocation5 + $0xe8] sm:$0xff]
        %v313 = vld [vmem:[#allocation5 + $0xf0] sm:$0xff]
        %v314 = vld [vmem:[#allocation5 + $0xf8] sm:$0xff]
        %315 = vmatprep.subr.mxu0 0.0
        %316 = vmatpush1.msra.mxu0 %v283
        %317 = vmatprep.subr.mxu0 0.0
        %318 = vmatpush1.msra.mxu0 %v284
        %319 = vmatprep.subr.mxu0 0.0
        %320 = vmatpush1.msra.mxu0 %v285
        %321 = vmatprep.subr.mxu0 0.0
        %322 = vmatpush1.msra.mxu0 %v286
        %323 = vmatprep.subr.mxu0 0.0
        %324 = vmatpush1.msra.mxu0 %v287
        %325 = vmatprep.subr.mxu0 0.0
        %326 = vmatpush1.msra.mxu0 %v288
        %327 = vmatprep.subr.mxu0 0.0
        %328 = vmatpush1.msra.mxu0 %v289
        %329 = vmatprep.subr.mxu0 0.0
        %330 = vmatpush1.msra.mxu0 %v290
        %331 = vmatprep.subr.mxu0 0.0
        %332 = vmatpush1.msra.mxu0 %v291
        %333 = vmatprep.subr.mxu0 0.0
        %334 = vmatpush1.msra.mxu0 %v292
        %335 = vmatprep.subr.mxu0 0.0
        %336 = vmatpush1.msra.mxu0 %v293
        %337 = vmatprep.subr.mxu0 0.0
        %338 = vmatpush1.msra.mxu0 %v294
        %339 = vmatprep.subr.mxu0 0.0
        %340 = vmatpush1.msra.mxu0 %v295
        %341 = vmatprep.subr.mxu0 0.0
        %342 = vmatpush1.msra.mxu0 %v296
        %343 = vmatprep.subr.mxu0 0.0
        %344 = vmatpush1.msra.mxu0 %v297
        %345 = vmatprep.subr.mxu0 0.0
        %346 = vmatpush1.msra.mxu0 %v298
        %347 = vmatprep.subr.mxu0 0.0
        %348 = vmatpush1.msra.mxu0 %v299
        %349 = vmatprep.subr.mxu0 0.0
        %350 = vmatpush1.msra.mxu0 %v300
        %351 = vmatprep.subr.mxu0 0.0
        %352 = vmatpush1.msra.mxu0 %v301
        %353 = vmatprep.subr.mxu0 0.0
        %354 = vmatpush1.msra.mxu0 %v302
        %355 = vmatprep.subr.mxu0 0.0
        %356 = vmatpush1.msra.mxu0 %v303
        %357 = vmatprep.subr.mxu0 0.0
        %358 = vmatpush1.msra.mxu0 %v304
        %359 = vmatprep.subr.mxu0 0.0
        %360 = vmatpush1.msra.mxu0 %v305
        %361 = vmatprep.subr.mxu0 0.0
        %362 = vmatpush1.msra.mxu0 %v306
        %363 = vmatprep.subr.mxu0 0.0
        %364 = vmatpush1.msra.mxu0 %v307
        %365 = vmatprep.subr.mxu0 0.0
        %366 = vmatpush1.msra.mxu0 %v308
        %367 = vmatprep.subr.mxu0 0.0
        %368 = vmatpush1.msra.mxu0 %v309
        %369 = vmatprep.subr.mxu0 0.0
        %370 = vmatpush1.msra.mxu0 %v310
        %371 = vmatprep.subr.mxu0 0.0
        %372 = vmatpush1.msra.mxu0 %v311
        %373 = vmatprep.subr.mxu0 0.0
        %374 = vmatpush1.msra.mxu0 %v312
        %375 = vmatprep.subr.mxu0 0.0
        %376 = vmatpush1.msra.mxu0 %v313
        %377 = vmatprep.subr.mxu0 0.0
        %378 = vmatpush1.msra.mxu0 %v314
        %379 = vmatprep.mubr.f32.mxu0 %v280
        %380 = vmatmul.mubr.f32.gmra.mrb[0].mxu0 %v279
        %v381 = vpop.f32.mrb[0].mxu0
        %v382 = vadd.f32 0.0, %v381
        %v383 = vpop.f32.mrb[0].mxu0
        %384 = vmatprep.mubr.f32.mxu0 %v282
        %385 = vmatmul.mubr.f32.gmra.mrb[0].mxu0 %v281
        %v386 = vpop.f32.mrb[0].mxu0
        %v387 = vadd.f32 0.0, %v386
        %v388 = vpop.f32.mrb[0].mxu0
        %389 = vdwg.mxu0
        %v390 = vld [vmem:[#allocation7] sm:$0xff]
        %v391 = vld [vmem:[#allocation7 + $0x8] sm:$0xff]
        %v392 = vld [vmem:[#allocation7 + $0x10] sm:$0xff]
        %v393 = vld [vmem:[#allocation7 + $0x18] sm:$0xff]
        %v394 = vld [vmem:[#allocation7 + $0x20] sm:$0xff]
        %v395 = vld [vmem:[#allocation7 + $0x28] sm:$0xff]
        %v396 = vld [vmem:[#allocation7 + $0x30] sm:$0xff]
        %v397 = vld [vmem:[#allocation7 + $0x38] sm:$0xff]
        %v398 = vld [vmem:[#allocation7 + $0x40] sm:$0xff]
        %v399 = vld [vmem:[#allocation7 + $0x48] sm:$0xff]
        %v400 = vld [vmem:[#allocation7 + $0x50] sm:$0xff]
        %v401 = vld [vmem:[#allocation7 + $0x58] sm:$0xff]
        %v402 = vld [vmem:[#allocation7 + $0x60] sm:$0xff]
        %v403 = vld [vmem:[#allocation7 + $0x68] sm:$0xff]
        %v404 = vld [vmem:[#allocation7 + $0x70] sm:$0xff]
        %v405 = vld [vmem:[#allocation7 + $0x78] sm:$0xff]
        %v406 = vld [vmem:[#allocation7 + $0x80] sm:$0xff]
        %v407 = vld [vmem:[#allocation7 + $0x88] sm:$0xff]
        %v408 = vld [vmem:[#allocation7 + $0x90] sm:$0xff]
        %v409 = vld [vmem:[#allocation7 + $0x98] sm:$0xff]
        %v410 = vld [vmem:[#allocation7 + $0xa0] sm:$0xff]
        %v411 = vld [vmem:[#allocation7 + $0xa8] sm:$0xff]
        %v412 = vld [vmem:[#allocation7 + $0xb0] sm:$0xff]
        %v413 = vld [vmem:[#allocation7 + $0xb8] sm:$0xff]
        %v414 = vld [vmem:[#allocation7 + $0xc0] sm:$0xff]
        %v415 = vld [vmem:[#allocation7 + $0xc8] sm:$0xff]
        %v416 = vld [vmem:[#allocation7 + $0xd0] sm:$0xff]
        %v417 = vld [vmem:[#allocation7 + $0xd8] sm:$0xff]
        %v418 = vld [vmem:[#allocation7 + $0xe0] sm:$0xff]
        %v419 = vld [vmem:[#allocation7 + $0xe8] sm:$0xff]
        %v420 = vld [vmem:[#allocation7 + $0xf0] sm:$0xff]
        %v421 = vld [vmem:[#allocation7 + $0xf8] sm:$0xff]
        %422 = vmatprep.subr.mxu0 0.0
        %423 = vmatpush1.msra.mxu0 %v390
        %424 = vmatprep.subr.mxu0 0.0
        %425 = vmatpush1.msra.mxu0 %v391
        %426 = vmatprep.subr.mxu0 0.0
        %427 = vmatpush1.msra.mxu0 %v392
        %428 = vmatprep.subr.mxu0 0.0
        %429 = vmatpush1.msra.mxu0 %v393
        %430 = vmatprep.subr.mxu0 0.0
        %431 = vmatpush1.msra.mxu0 %v394
        %432 = vmatprep.subr.mxu0 0.0
        %433 = vmatpush1.msra.mxu0 %v395
        %434 = vmatprep.subr.mxu0 0.0
        %435 = vmatpush1.msra.mxu0 %v396
        %436 = vmatprep.subr.mxu0 0.0
        %437 = vmatpush1.msra.mxu0 %v397
        %438 = vmatprep.subr.mxu0 0.0
        %439 = vmatpush1.msra.mxu0 %v398
        %440 = vmatprep.subr.mxu0 0.0
        %441 = vmatpush1.msra.mxu0 %v399
        %442 = vmatprep.subr.mxu0 0.0
        %443 = vmatpush1.msra.mxu0 %v400
        %444 = vmatprep.subr.mxu0 0.0
        %445 = vmatpush1.msra.mxu0 %v401
        %446 = vmatprep.subr.mxu0 0.0
        %447 = vmatpush1.msra.mxu0 %v402
        %448 = vmatprep.subr.mxu0 0.0
        %449 = vmatpush1.msra.mxu0 %v403
        %450 = vmatprep.subr.mxu0 0.0
        %451 = vmatpush1.msra.mxu0 %v404
        %452 = vmatprep.subr.mxu0 0.0
        %453 = vmatpush1.msra.mxu0 %v405
        %454 = vmatprep.subr.mxu0 0.0
        %455 = vmatpush1.msra.mxu0 %v406
        %456 = vmatprep.subr.mxu0 0.0
        %457 = vmatpush1.msra.mxu0 %v407
        %458 = vmatprep.subr.mxu0 0.0
        %459 = vmatpush1.msra.mxu0 %v408
        %460 = vmatprep.subr.mxu0 0.0
        %461 = vmatpush1.msra.mxu0 %v409
        %462 = vmatprep.subr.mxu0 0.0
        %463 = vmatpush1.msra.mxu0 %v410
        %464 = vmatprep.subr.mxu0 0.0
        %465 = vmatpush1.msra.mxu0 %v411
        %466 = vmatprep.subr.mxu0 0.0
        %467 = vmatpush1.msra.mxu0 %v412
        %468 = vmatprep.subr.mxu0 0.0
        %469 = vmatpush1.msra.mxu0 %v413
        %470 = vmatprep.subr.mxu0 0.0
        %471 = vmatpush1.msra.mxu0 %v414
        %472 = vmatprep.subr.mxu0 0.0
        %473 = vmatpush1.msra.mxu0 %v415
        %474 = vmatprep.subr.mxu0 0.0
        %475 = vmatpush1.msra.mxu0 %v416
        %476 = vmatprep.subr.mxu0 0.0
        %477 = vmatpush1.msra.mxu0 %v417
        %478 = vmatprep.subr.mxu0 0.0
        %479 = vmatpush1.msra.mxu0 %v418
        %480 = vmatprep.subr.mxu0 0.0
        %481 = vmatpush1.msra.mxu0 %v419
        %482 = vmatprep.subr.mxu0 0.0
        %483 = vmatpush1.msra.mxu0 %v420
        %484 = vmatprep.subr.mxu0 0.0
        %485 = vmatpush1.msra.mxu0 %v421
        %486 = vmatprep.mubr.f32.mxu0 %v280
        %487 = vmatmul.mubr.f32.gmra.mrb[0].mxu0 %v279
        %v488 = vpop.f32.mrb[0].mxu0
        %v489 = vadd.f32 0.0, %v488
        %v490 = vpop.f32.mrb[0].mxu0
        %491 = vmatprep.mubr.f32.mxu0 %v282
        %492 = vmatmul.mubr.f32.gmra.mrb[0].mxu0 %v281
        %v493 = vpop.f32.mrb[0].mxu0
        %v494 = vadd.f32 0.0, %v493
        %v495 = vpop.f32.mrb[0].mxu0
        %496 = vdwg.mxu0
        %v497 = vld [vmem:[#allocation2] sm:$0xff]
        %v498 = vld [vmem:[#allocation2 + $0x8] sm:$0xff]
        %vm499 = vcmask 130048
        %v501 = vsel %vm499, %v497, 0
        %v504 = vsel %vm499, %v498, 0
        %506 = vmatprep.subr.mxu0 0.0
        %507 = vmatpush1.msra.mxu0 %v489
        %508 = vmatprep.subr.mxu0 0.0
        %509 = vmatpush1.msra.mxu0 %v494
        %510 = vmatprep.subr.mxu0 0.0
        %511 = vmatpush1.msra.mxu0 0.0
        %512 = vmatprep.subr.mxu0 0.0
        %513 = vmatpush1.msra.mxu0 0.0
        %514 = vmatprep.subr.mxu0 0.0
        %515 = vmatpush1.msra.mxu0 0.0
        %516 = vmatprep.subr.mxu0 0.0
        %517 = vmatpush1.msra.mxu0 0.0
        %518 = vmatprep.subr.mxu0 0.0
        %519 = vmatpush1.msra.mxu0 0.0
        %520 = vmatprep.subr.mxu0 0.0
        %521 = vmatpush1.msra.mxu0 0.0
        %522 = vmatprep.subr.mxu0 0.0
        %523 = vmatpush1.msra.mxu0 0.0
        %524 = vmatprep.subr.mxu0 0.0
        %525 = vmatpush1.msra.mxu0 0.0
        %526 = vmatprep.subr.mxu0 0.0
        %527 = vmatpush1.msra.mxu0 0.0
        %528 = vmatprep.subr.mxu0 0.0
        %529 = vmatpush1.msra.mxu0 0.0
        %530 = vmatprep.subr.mxu0 0.0
        %531 = vmatpush1.msra.mxu0 0.0
        %532 = vmatprep.subr.mxu0 0.0
        %533 = vmatpush1.msra.mxu0 0.0
        %534 = vmatprep.subr.mxu0 0.0
        %535 = vmatpush1.msra.mxu0 0.0
        %536 = vmatprep.subr.mxu0 0.0
        %537 = vmatpush1.msra.mxu0 0.0
        %538 = vmatprep.subr.mxu0 0.0
        %539 = vmatpush1.msra.mxu0 0.0
        %540 = vmatprep.subr.mxu0 0.0
        %541 = vmatpush1.msra.mxu0 0.0
        %542 = vmatprep.subr.mxu0 0.0
        %543 = vmatpush1.msra.mxu0 0.0
        %544 = vmatprep.subr.mxu0 0.0
        %545 = vmatpush1.msra.mxu0 0.0
        %546 = vmatprep.subr.mxu0 0.0
        %547 = vmatpush1.msra.mxu0 0.0
        %548 = vmatprep.subr.mxu0 0.0
        %549 = vmatpush1.msra.mxu0 0.0
        %550 = vmatprep.subr.mxu0 0.0
        %551 = vmatpush1.msra.mxu0 0.0
        %552 = vmatprep.subr.mxu0 0.0
        %553 = vmatpush1.msra.mxu0 0.0
        %554 = vmatprep.subr.mxu0 0.0
        %555 = vmatpush1.msra.mxu0 0.0
        %556 = vmatprep.subr.mxu0 0.0
        %557 = vmatpush1.msra.mxu0 0.0
        %558 = vmatprep.subr.mxu0 0.0
        %559 = vmatpush1.msra.mxu0 0.0
        %560 = vmatprep.subr.mxu0 0.0
        %561 = vmatpush1.msra.mxu0 0.0
        %562 = vmatprep.subr.mxu0 0.0
        %563 = vmatpush1.msra.mxu0 0.0
        %564 = vmatprep.subr.mxu0 0.0
        %565 = vmatpush1.msra.mxu0 0.0
        %566 = vmatprep.subr.mxu0 0.0
        %567 = vmatpush1.msra.mxu0 0.0
        %568 = vmatprep.subr.mxu0 0.0
        %569 = vmatpush1.msra.mxu0 0.0
        %570 = vmatprep.mubr.f32.mxu0 0.0
        %571 = vmatmul.mubr.f32.gmra.mrb[0].mxu0 %v501
        %v572 = vpop.f32.mrb[0].mxu0
        %v573 = vadd.f32 0.0, %v572
        %v574 = vpop.f32.mrb[0].mxu0
        %575 = vmatprep.mubr.f32.mxu0 0.0
        %576 = vmatmul.mubr.f32.gmra.mrb[0].mxu0 %v504
        %v577 = vpop.f32.mrb[0].mxu0
        %v578 = vadd.f32 0.0, %v577
        %v579 = vpop.f32.mrb[0].mxu0
        %580 = vdwg.mxu0
        %v581 = vmul.f32 %v573, 0.5
        %v582 = vmul.f32 %v578, 0.5
        %v583 = vtanh.pop %v581
        %v584 = vtanh.pop %v582
        %v585 = vadd.f32 %v583, 1.0
        %v586 = vadd.f32 %v584, 1.0
        %v587 = vmul.f32 %v585, 0.5
        %v588 = vmul.f32 %v586, 0.5
        %s589 = smul.u32 %s28, 128
        %v590 = vlaneseq
        %v591 = vand.u32 %v590, 127
        %v592 = vstv %s589
        %v593 = vadd.s32 %v592, %v591
        %v594 = vmul.u32 %v593, 2
        %v595 = vadd.s32 %v594, 1
        %vm596 = vcmp.ge.s32.totalorder %v595, 15
        %v597 = vsel %vm596, 1, 0
        %vm598 = vcmp.eq.s32.totalorder %v597, 1
        %v599 = vsel %vm598, 1.0, %v587
        %v600 = vsel %vm598, 1.0, %v588
        %v601 = vmul.f32 %v382, 0.5
        %v602 = vmul.f32 %v387, 0.5
        %v603 = vsub.f32 %v599, 0.5
        %v604 = vsub.f32 %v600, 0.5
        %v605 = vmul.f32 %v489, %v603
        %v606 = vmul.f32 %v494, %v604
        %v607 = vadd.f32 %v601, %v605
        %v608 = vadd.f32 %v602, %v606
        %609 = vst [vmem:[%s277] sm:$0xff] %v607
        %610 = vst [vmem:[%s277 + $0x8] sm:$0xff] %v608
        %s611 = sand.u32 %s136, 1
        %s612 = scalar_lea.sflag [#allocation4], %s611
        %s613 = sand.u32 %s136, 1
        %s614 = smul.addr %s613, 16
        %s615 = scalar_lea.vmem [#allocation10], %s614
        // Predicated region
        $region53: #{tpu_custom_call.1} parent=35 // pred_check
          %p616 = pneg %p146
        $region54: #{tpu_custom_call.1} parent=35 // pred_check_branch
          %618 = sbr.rel (%p616) target = $region56
        $region55: #{tpu_custom_call.1} parent=35 // pred_region
          %s620 = ssub.s32 256, 256
          %621 = vsyncadd %s612, %s620
          %s622 = smul.addr %s27, 2
          %s623 = sadd.s32 %s28, %s622
          %s624 = smul.addr %s623, 128
          %s625 = scalar_lea.hbm %s4, %s624
          %s626 = sshll.u32 %s615, 4
          %s627 = int_to_ptr.vmem [resolvable:$true] %s626
          %632 = dma.vmem_to_hbm [thread:$0]  %s627, 256, %s625, %s612, 128, 128, 8
        $region56: #{tpu_custom_call.1} parent=35 // pred_fallthru
          _
      $region36: #{tpu_custom_call.1} parent=5 // pred_fallthru
        _
      %p633 = scmp.le.s32.totalorder 2, %s18
      // Predicated region
      $region57: #{tpu_custom_call.1} parent=5 // pred_check
        %p634 = pneg %p633
      $region58: #{tpu_custom_call.1} parent=5 // pred_check_branch
        %636 = sbr.rel (%p634) target = $region60
      $region59: #{tpu_custom_call.1} parent=5 // pred_region
        %s637 = ssub.s32 %s18, 2
        // Predicated region
        $region61: #{tpu_custom_call.1} parent=59 // pred_check
          %p638 = pneg %p152
        $region62: #{tpu_custom_call.1} parent=59 // pred_check_branch
          %640 = sbr.rel (%p638) target = $region64
        $region63: #{tpu_custom_call.1} parent=59 // pred_region
          %s641 = sand.u32 %s137, 1
          %s642 = scalar_lea.sflag [#allocation4], %s641
          %s643 = sand.u32 %s137, 1
          %s644 = smul.addr %s643, 16
          %s645 = scalar_lea.vmem [#allocation10], %s644
          %646 = dma.done %s642, 256
        $region64: #{tpu_custom_call.1} parent=59 // pred_fallthru
          _
      $region60: #{tpu_custom_call.1} parent=5 // pred_fallthru
        _
    $region6: #{tpu_custom_call.1} parent=1 // loop_footer
      %s22 = sadd.s32 1, %s18
    $region7: #{tpu_custom_call.1} parent=1 // loop_footer_branch
      %17 = sbr.rel target = $region3
    $region8: #{tpu_custom_call.1} parent=1 // loop_exit
      _
    %647 = vsyncpa [#allocation3], 1
    %s648 = scalar_lea.sflag [#allocation3], 1
    %649 = vsyncpa %s648, 1
    %650 = vsyncpa [#allocation6], 1
    %651 = vsyncpa [#allocation9], 1
    %s652 = scalar_lea.sflag [#allocation9], 1
    %653 = vsyncpa %s652, 1
    %654 = vsyncpa [#allocation4], 1
    %s655 = scalar_lea.sflag [#allocation4], 1
    %656 = vsyncpa %s655, 1

</llo_original>
